<compile_context>
chip_gen: v7x
topology: tpu7x:2x2x1
jax: 0.10.0
libtpu: 0.0.40
codegen_flags: <defaults>
</compile_context>

<pallas_src>
import functools
import math

import jax
import jax.numpy as jnp
from jax.experimental import pallas as pl
from jax.experimental.pallas import tpu as pltpu


def _drop_path_kernel(x_ref, scale_ref, o_ref):
    # x_ref / o_ref: (TR, 128) lane-dense tile of one sample's features.
    # scale_ref:     (B,) per-sample scale = keep_mask / keep_prob, f32 in SMEM.
    b = pl.program_id(0)
    s = scale_ref[b].astype(o_ref.dtype)   # scalar read + scalar cast (free)
    o_ref[...] = x_ref[...] * s            # pure VPU broadcast multiply


_TARGET_BLOCK_BYTES = 2 * 1024 * 1024  # ~2 MiB/block: 4 live buffers ~= 8 MiB VMEM
_TINY_BYTES = 4 * 1024                 # kept small so the demo below exercises the
                                       # kernel; production could raise toward ~1 MiB


@functools.partial(jax.jit, static_argnames=("drop_prob", "block_rows"))
def _drop_path_apply(x, key, drop_prob, block_rows=None):
    keep_prob = 1.0 - drop_prob
    B = x.shape[0]
    F = math.prod(x.shape[1:])

    # Per-sample keep mask, drawn in x.dtype to match torch's
    # `keep_prob + rand(dtype=x.dtype)` -> floor_() semantics.
    rand = jax.random.uniform(key, (B,), dtype=x.dtype)
    mask = jnp.floor(keep_prob + rand)
    # Hoisted per-sample scale: one divide for the whole tensor.
    scale = mask.astype(jnp.float32) / keep_prob

    total_bytes = B * F * x.dtype.itemsize
    if F % 128 != 0 or total_bytes < _TINY_BYTES:
        # Non-lane-aligned feature count or trivially small tensor: let XLA
        # fuse the broadcast multiply (already at HBM roofline).
        return x * scale.astype(x.dtype).reshape((B,) + (1,) * (x.ndim - 1))

    R = F // 128
    xr = x.reshape(B, R, 128)

    if block_rows is None:
        bytes_per_row = 128 * x.dtype.itemsize
        block_rows = max(8, (_TARGET_BLOCK_BYTES // bytes_per_row) // 8 * 8)
    # Full feature extent if it fits, otherwise an 8-aligned row tile
    # (remainder rows on the last grid step are masked by Pallas).
    TR = R if R <= block_rows else block_rows
    grid = (B, pl.cdiv(R, TR))

    out = pl.pallas_call(
        _drop_path_kernel,
        out_shape=jax.ShapeDtypeStruct((B, R, 128), x.dtype),
        grid=grid,
        in_specs=[
            pl.BlockSpec((None, TR, 128), lambda b, r: (b, r, 0)),
            pl.BlockSpec(memory_space=pltpu.MemorySpace.SMEM),
        ],
        out_specs=pl.BlockSpec((None, TR, 128), lambda b, r: (b, r, 0)),
        compiler_params=pltpu.CompilerParams(
            dimension_semantics=("parallel", "parallel"),
        ),
    )(xr, scale)
    return out.reshape(x.shape)


class DropPath:
    """JAX/Pallas equivalent of the PyTorch DropPath module (forward pass)."""

    def __init__(self, drop_prob=None):
        self.drop_prob = drop_prob
        self.training = True

    def __call__(self, x, key):
        if self.drop_prob is None or self.drop_prob == 0.0 or not self.training:
            return x
        return _drop_path_apply(x, key, float(self.drop_prob))


if __name__ == "__main__":
    root = jax.random.PRNGKey(0)
    kx, kmask = jax.random.split(root)

    drop_prob = 0.2
    keep_prob = 1.0 - drop_prob

    # NCHW input: batch=2, channels=4, spatial=16x16  ->  F = 1024 (lane aligned)
    x = jax.random.normal(kx, (2, 4, 16, 16), dtype=jnp.float32)

    module = DropPath(drop_prob=drop_prob)
    module.training = True
    out = jax.block_until_ready(module(x, kmask))

    # Reference: same formula / same RNG draw as torch's drop_path.
    B = x.shape[0]
    rand = jax.random.uniform(kmask, (B,), dtype=x.dtype)
    mask = jnp.floor(keep_prob + rand).reshape((B,) + (1,) * (x.ndim - 1))
    ref = x / keep_prob * mask
    assert jnp.allclose(out, ref, atol=1e-6, rtol=1e-5), "mismatch vs reference"

    # Exercise the multi-tile path with a remainder-masked last block
    # (F = 1280 -> R = 10 rows, forced row tile of 8).
    x2 = jax.random.normal(kx, (3, 5, 16, 16), dtype=jnp.float32)
    out2 = jax.block_until_ready(_drop_path_apply(x2, kmask, drop_prob, block_rows=8))
    B2 = x2.shape[0]
    rand2 = jax.random.uniform(kmask, (B2,), dtype=x2.dtype)
    mask2 = jnp.floor(keep_prob + rand2).reshape((B2,) + (1,) * (x2.ndim - 1))
    ref2 = x2 / keep_prob * mask2
    assert jnp.allclose(out2, ref2, atol=1e-6, rtol=1e-5), "mismatch on tiled path"

    # Eval mode / drop_prob == 0 returns x unchanged (matches torch).
    module.training = False
    assert jnp.array_equal(module(x, kmask), x)

    print("KERNEL_OK")
</pallas_src>

<mosaic_0001>
module attributes {stable_mosaic.version = 11 : i64} {
  func.func @_drop_path_kernel(%arg0: i32, %arg1: i32, %arg2: memref<1x8x128xf32, #tpu.memory_space<vmem>>, %arg3: memref<2xf32, #tpu.memory_space<smem>>, %arg4: memref<1x8x128xf32, #tpu.memory_space<vmem>>) attributes {dimension_semantics = [#tpu.dimension_semantics<parallel>, #tpu.dimension_semantics<parallel>], iteration_bounds = array<i64: 2, 1>, scalar_prefetch = 0 : i64, scratch_operands = 0 : i64, tpu.core_type = #tpu.core_type<tc>, window_params = [{transform_indices = @transform_0, window_bounds = array<i64: 1, 8, 128>}, {transform_indices = @transform_1, window_bounds = array<i64: 2>}, {transform_indices = @transform_2, window_bounds = array<i64: 1, 8, 128>}]} {
    %0 = arith.index_cast %arg0 : i32 to index
    %1 = memref.load %arg3[%0] : memref<2xf32, #tpu.memory_space<smem>>
    %c0 = arith.constant 0 : index
    %c0_0 = arith.constant 0 : index
    %c0_1 = arith.constant 0 : index
    %2 = vector.load %arg2[%c0, %c0_0, %c0_1] : memref<1x8x128xf32, #tpu.memory_space<vmem>>, vector<1x8x128xf32>
    %3 = vector.shape_cast %2 : vector<1x8x128xf32> to vector<8x128xf32>
    %4 = vector.broadcast %1 : f32 to vector<8x128xf32>
    %5 = arith.mulf %3, %4 : vector<8x128xf32>
    %c0_2 = arith.constant 0 : index
    %c0_3 = arith.constant 0 : index
    %c0_4 = arith.constant 0 : index
    %6 = vector.load %arg4[%c0_2, %c0_3, %c0_4] : memref<1x8x128xf32, #tpu.memory_space<vmem>>, vector<1x8x128xf32>
    %7 = vector.shape_cast %6 : vector<1x8x128xf32> to vector<8x128xf32>
    %8 = vector.shape_cast %5 : vector<8x128xf32> to vector<1x8x128xf32>
    tpu.vector_store %arg4[%c0_2, %c0_3, %c0_4], %8 {strides = array<i32>} : memref<1x8x128xf32, #tpu.memory_space<vmem>>, vector<1x8x128xf32>,
    return
  }
  func.func @transform_0(%arg0: i32, %arg1: i32) -> (i32, i32, i32) {
    %c0_i32 = arith.constant 0 : i32
    %c0_i32_0 = arith.constant 0 : i32
    return %arg0, %arg1, %c0_i32 : i32, i32, i32
  }
  func.func @transform_1(%arg0: i32, %arg1: i32) -> i32 {
    %c0_i32 = arith.constant 0 : i32
    %c0_i32_0 = arith.constant 0 : i32
    return %c0_i32 : i32
  }
  func.func @transform_2(%arg0: i32, %arg1: i32) -> (i32, i32, i32) {
    %c0_i32 = arith.constant 0 : i32
    %c0_i32_0 = arith.constant 0 : i32
    return %arg0, %arg1, %c0_i32 : i32, i32, i32
  }
}

</mosaic_0001>

<llo_original>
// kernel: _drop_path_apply.1
$region0: #{_drop_path_apply.1}
  #allocation0 [shape = 'u32[]', space=smem, size = 0x4, offset = 0x4, fixed_abs, tag = 'smem constant byte address 0x4 - core index']
  #allocation1 [shape = 'u32[144,128]{1,0:T(1,128)}', space=vmem, size = 0x12000, scoped, tag = 'internal scratch']
  %s0 = inlined_call_operand.vmem [shape: f32[2,8,128], index: 0, kind: input, shape index: {}]
  %s1 = inlined_call_operand.vmem [shape: f32[2], index: 1, kind: input, shape index: {}]
  %s2 = inlined_call_operand.vmem [shape: f32[2,8,128], index: 2, kind: output, shape index: {}]
  %s3 = sld [smem:[#allocation0]]
  $region45: #{_drop_path_apply.1} parent=0
    _
  %s5 = ssub.s32 1, %s3
  %s6 = scalar_select 0, %s5, %s3
  $region1: #{_drop_path_apply.1} parent=0
    #allocation2 [shape = 'u8[512]{0}', space=smem, size = 0x200, scoped, tag = 'input window, operand 1, single buffered']
    #allocation3 [shape = 's32[2]{0}', space=sflag, size = 0x8, scoped, tag = 'scoped memory for _drop_path_apply.1']
    %7 = vsyncpa [#allocation3], 0
    loop: start=0, step=1, limit=4
    $region2: #{_drop_path_apply.1} parent=1 // loop_pre_header
      _
    $region3: #{_drop_path_apply.1} parent=1 // loop_header
      %s9 = sphi 0, %s13
      %p10 = scmp.ge.s32.totalorder %s9, 4
      %s16 = sphi 0, %s28
      %s17 = sphi 0, %s24
      %s18 = sphi 0, %s16
      %s19 = sphi 0, %s17
      %s20 = sphi 0, %s18
      %s21 = sphi 0, %s19
      %s33 = sphi 0, %s35
      %s36 = sphi 0, %s33
      %s37 = sphi 0, %s36
      %s53 = sphi 0, %s37
      %s57 = sphi 0, %s57
      %s59 = sphi 0, %s57
      %s60 = sphi 0, %s59
      %s74 = sphi 0, %s60
      %s82 = sphi 0, %s84
      %s85 = sphi 0, %s82
      %s86 = sphi 0, %s85
      %s102 = sphi 0, %s86
    $region4: #{_drop_path_apply.1} parent=1 // loop_header_branch
      %12 = sbr.rel (%p10) target = $region8
    $region5: #{_drop_path_apply.1} parent=1 // loop_body
      %s14 = ssub.s32 %s9, 1
      %s15 = ssub.s32 %s9, 2
      %s22 = sadd.s32 1, %s17
      %p23 = scmp.ge.s32.totalorder %s22, 1
      %s24 = scalar_select %p23, 0, %s22
      %s25 = sadd.s32 1, %s16
      %s26 = scalar_select %p23, %s25, %s16
      %p27 = scmp.ge.s32.totalorder %s26, 2
      %s28 = scalar_select %p27, 0, %s26
      %s29 = ssub.s32 %s16, %s28
      %s30 = ssub.s32 %s17, %s24
      %s31 = sor.u32 %s29, %s30
      %p32 = scmp.eq.s32.totalorder %s31, 0
      %s34 = sadd.s32 %s33, 1
      %s35 = scalar_select %p32, %s33, %s34
      %p38 = pneg %p32
      %p39 = scmp.eq.s32.totalorder %s9, 1
      %p40 = por %p38, %p39
      %p41 = scmp.ne.s32.totalorder %s33, %s36
      %p42 = scmp.eq.s32.totalorder %s9, 0
      %p43 = por %p41, %p42
      %p44 = scmp.ne.s32.totalorder %s33, %s36
      %p45 = scmp.eq.s32.totalorder %s14, 1
      %p46 = por %p44, %p45
      %p47 = scmp.ne.s32.totalorder %s36, %s37
      %p48 = scmp.eq.s32.totalorder %s14, 0
      %p49 = por %p47, %p48
      %p50 = scmp.ne.s32.totalorder %s36, %s37
      %p51 = scmp.eq.s32.totalorder %s15, 1
      %p52 = por %p50, %p51
      %p54 = scmp.ne.s32.totalorder %s37, %s53
      %p55 = scmp.eq.s32.totalorder %s15, 0
      %p56 = por %p54, %p55
      %s58 = sadd.s32 %s57, 1
      %p61 = scmp.eq.s32.totalorder %s9, 1
      %p62 = scmp.ne.s32.totalorder %s57, %s59
      %p63 = scmp.eq.s32.totalorder %s9, 0
      %p64 = por %p62, %p63
      %p65 = scmp.ne.s32.totalorder %s57, %s59
      %p66 = scmp.eq.s32.totalorder %s14, 1
      %p67 = por %p65, %p66
      %p68 = scmp.ne.s32.totalorder %s59, %s60
      %p69 = scmp.eq.s32.totalorder %s14, 0
      %p70 = por %p68, %p69
      %p71 = scmp.ne.s32.totalorder %s59, %s60
      %p72 = scmp.eq.s32.totalorder %s15, 1
      %p73 = por %p71, %p72
      %p75 = scmp.ne.s32.totalorder %s60, %s74
      %p76 = scmp.eq.s32.totalorder %s15, 0
      %p77 = por %p75, %p76
      %s78 = ssub.s32 %s16, %s28
      %s79 = ssub.s32 %s17, %s24
      %s80 = sor.u32 %s78, %s79
      %p81 = scmp.eq.s32.totalorder %s80, 0
      %s83 = sadd.s32 %s82, 1
      %s84 = scalar_select %p81, %s82, %s83
      %p87 = pneg %p81
      %p88 = scmp.eq.s32.totalorder %s9, 1
      %p89 = por %p87, %p88
      %p90 = scmp.ne.s32.totalorder %s82, %s85
      %p91 = scmp.eq.s32.totalorder %s9, 0
      %p92 = por %p90, %p91
      %p93 = scmp.ne.s32.totalorder %s82, %s85
      %p94 = scmp.eq.s32.totalorder %s14, 1
      %p95 = por %p93, %p94
      %p96 = scmp.ne.s32.totalorder %s85, %s86
      %p97 = scmp.eq.s32.totalorder %s14, 0
      %p98 = por %p96, %p97
      %p99 = scmp.ne.s32.totalorder %s85, %s86
      %p100 = scmp.eq.s32.totalorder %s15, 1
      %p101 = por %p99, %p100
      %p103 = scmp.ne.s32.totalorder %s86, %s102
      %p104 = scmp.eq.s32.totalorder %s15, 0
      %p105 = por %p103, %p104
      %p106 = scmp.le.s32.totalorder 1, %s9
      %p107 = scmp.lt.s32.totalorder %s9, 3
      %p108 = pnand %p106, %p107
      %p109 = pneg %p108
      // Predicated region
      $region9: #{_drop_path_apply.1} parent=5 // pred_check
        _
      $region10: #{_drop_path_apply.1} parent=5 // pred_check_branch
        %111 = sbr.rel (%p108) target = $region12
      $region11: #{_drop_path_apply.1} parent=5 // pred_region
        %s112 = ssub.s32 %s9, 1
        // Predicated region
        $region13: #{_drop_path_apply.1} parent=11 // pred_check
          %p113 = pneg %p70
        $region14: #{_drop_path_apply.1} parent=11 // pred_check_branch
          %115 = sbr.rel (%p113) target = $region16
        $region15: #{_drop_path_apply.1} parent=11 // pred_region
          %s117 = ssub.s32 16, 16
          %118 = vsyncadd [#allocation3], %s117
          %s120 = sshll.u32 %s1, 4
          %s121 = int_to_ptr.vmem [resolvable:$true] %s120
          %123 = dma.vmem_to_smem %s121, 16, [#allocation2], [#allocation3]
        $region16: #{_drop_path_apply.1} parent=11 // pred_fallthru
          _
      $region12: #{_drop_path_apply.1} parent=5 // pred_fallthru
        _
      %p124 = scmp.lt.s32.totalorder %s9, 2
      // Predicated region
      $region17: #{_drop_path_apply.1} parent=5 // pred_check
        %p125 = pneg %p124
      $region18: #{_drop_path_apply.1} parent=5 // pred_check_branch
        %127 = sbr.rel (%p125) target = $region20
      $region19: #{_drop_path_apply.1} parent=5 // pred_region
        // Predicated region
        $region21: #{_drop_path_apply.1} parent=19 // pred_check
          %p128 = pneg %p43
        $region22: #{_drop_path_apply.1} parent=19 // pred_check_branch
          %130 = sbr.rel (%p128) target = $region24
        $region23: #{_drop_path_apply.1} parent=19 // pred_region
          %p131 = scmp.lt.s32.totalorder %s16, 1
          %s132 = scalar_select %p131, %s16, 1
          %p133 = scmp.lt.s32.totalorder %s17, 0
          %s134 = scalar_select %p133, %s17, 0
          %s135 = sadd.s32 %s134, %s132
          %s136 = smul.addr %s135, 8
          %s137 = scalar_lea.vmem %s0, %s136
        $region24: #{_drop_path_apply.1} parent=19 // pred_fallthru
          _
      $region20: #{_drop_path_apply.1} parent=5 // pred_fallthru
        _
      %p138 = scmp.le.s32.totalorder 1, %s9
      %p139 = scmp.lt.s32.totalorder %s9, 3
      %p140 = pnand %p138, %p139
      %p141 = pneg %p140
      // Predicated region
      $region25: #{_drop_path_apply.1} parent=5 // pred_check
        _
      $region26: #{_drop_path_apply.1} parent=5 // pred_check_branch
        %143 = sbr.rel (%p140) target = $region28
      $region27: #{_drop_path_apply.1} parent=5 // pred_region
        %s144 = ssub.s32 %s9, 1
        // Predicated region
        $region29: #{_drop_path_apply.1} parent=27 // pred_check
          %p145 = pneg %p70
        $region30: #{_drop_path_apply.1} parent=27 // pred_check_branch
          %147 = sbr.rel (%p145) target = $region32
        $region31: #{_drop_path_apply.1} parent=27 // pred_region
          %148 = dma.done [#allocation3], 16
        $region32: #{_drop_path_apply.1} parent=27 // pred_fallthru
          _
        %149 = sfence
        %p150 = scmp.lt.s32.totalorder %s18, 1
        %s151 = scalar_select %p150, %s18, 1
        %p152 = scmp.lt.s32.totalorder %s19, 0
        %s153 = scalar_select %p152, %s19, 0
        %s154 = sadd.s32 %s153, %s151
        %s155 = smul.addr %s154, 8
        %s156 = scalar_lea.vmem %s0, %s155
        %p157 = pneg %p49
        %p158 = pneg %p46
        %p159 = pneg %p70
        %p160 = pneg %p67
        %p161 = pneg %p98
        %p162 = pneg %p95
        %p163 = scmp.lt.s32.totalorder %s18, 1
        %s164 = scalar_select %p163, %s18, 1
        %p165 = scmp.lt.s32.totalorder %s19, 0
        %s166 = scalar_select %p165, %s19, 0
        %s167 = sadd.s32 %s166, %s164
        %s168 = smul.addr %s167, 8
        %s169 = scalar_lea.vmem %s2, %s168
        %p170 = scmp.lt.s32.totalorder %s18, 1
        %s171 = scalar_select %p170, %s18, 1
        %p172 = scmp.lt.s32.totalorder %s19, 0
        %s173 = scalar_select %p172, %s19, 0
        %s174 = sadd.s32 %s173, %s171
        %s175 = smul.addr %s174, 8
        %s176 = scalar_lea.vmem %s0, %s175
        %p177 = scmp.lt.s32.totalorder %s18, 1
        %s178 = scalar_select %p177, %s18, 1
        %p179 = scmp.lt.s32.totalorder %s19, 0
        %s180 = scalar_select %p179, %s19, 0
        %s181 = sadd.s32 %s180, %s178
        %s182 = smul.addr %s181, 8
        %s183 = scalar_lea.vmem %s2, %s182
        %s184 = sld [smem:[#allocation2 + %s18]]
        %v185 = vld [vmem:[%s176] sm:$0xff]
        %v186 = vstv %s184
        %v187 = vmul.f32 %v185, %v186
        %188 = vst [vmem:[%s183] sm:$0xff] %v187
        %p189 = scmp.lt.s32.totalorder %s18, 1
        %s190 = scalar_select %p189, %s18, 1
        %p191 = scmp.lt.s32.totalorder %s19, 0
        %s192 = scalar_select %p191, %s19, 0
        %s193 = sadd.s32 %s192, %s190
        %s194 = smul.addr %s193, 8
        %s195 = scalar_lea.vmem %s2, %s194
        // Predicated region
        $region33: #{_drop_path_apply.1} parent=27 // pred_check
          %p196 = pneg %p95
        $region34: #{_drop_path_apply.1} parent=27 // pred_check_branch
          %198 = sbr.rel (%p196) target = $region36
        $region35: #{_drop_path_apply.1} parent=27 // pred_region
          _
        $region36: #{_drop_path_apply.1} parent=27 // pred_fallthru
          _
      $region28: #{_drop_path_apply.1} parent=5 // pred_fallthru
        _
      %p199 = scmp.le.s32.totalorder 2, %s9
      // Predicated region
      $region37: #{_drop_path_apply.1} parent=5 // pred_check
        %p200 = pneg %p199
      $region38: #{_drop_path_apply.1} parent=5 // pred_check_branch
        %202 = sbr.rel (%p200) target = $region40
      $region39: #{_drop_path_apply.1} parent=5 // pred_region
        %s203 = ssub.s32 %s9, 2
        // Predicated region
        $region41: #{_drop_path_apply.1} parent=39 // pred_check
          %p204 = pneg %p101
        $region42: #{_drop_path_apply.1} parent=39 // pred_check_branch
          %206 = sbr.rel (%p204) target = $region44
        $region43: #{_drop_path_apply.1} parent=39 // pred_region
          %p207 = scmp.lt.s32.totalorder %s20, 1
          %s208 = scalar_select %p207, %s20, 1
          %p209 = scmp.lt.s32.totalorder %s21, 0
          %s210 = scalar_select %p209, %s21, 0
          %s211 = sadd.s32 %s210, %s208
          %s212 = smul.addr %s211, 8
          %s213 = scalar_lea.vmem %s2, %s212
        $region44: #{_drop_path_apply.1} parent=39 // pred_fallthru
          _
      $region40: #{_drop_path_apply.1} parent=5 // pred_fallthru
        _
    $region6: #{_drop_path_apply.1} parent=1 // loop_footer
      %s13 = sadd.s32 1, %s9
    $region7: #{_drop_path_apply.1} parent=1 // loop_footer_branch
      %8 = sbr.rel target = $region3
    $region8: #{_drop_path_apply.1} parent=1 // loop_exit
      _
    %214 = vsyncpa [#allocation3], 1
    %s215 = scalar_lea.sflag [#allocation3], 1
    %216 = vsyncpa %s215, 1

</llo_original>
